<compile_context>
chip_gen: v5e
topology: v5e:2x2
jax: 0.10.0
libtpu: 0.0.40
codegen_flags: <defaults>
</compile_context>

<pallas_src>
import functools

import jax
import jax.numpy as jnp
from jax.experimental import pallas as pl
from jax.experimental.pallas import tpu as pltpu


def _sdp_kernel(q_ref, k_ref, v_ref, u_ref, o_ref, *, dropout_p):
    q = q_ref[...]          # (B, S, D)  float32
    k = k_ref[...]          # (B, S, D)
    v = v_ref[...]          # (B, D, Dv) == (B, S, D) here

    # relu(query + key)
    s = jnp.maximum(q + k, 0.0)

    # numerically stable softmax over the last dim
    s = s - jnp.max(s, axis=-1, keepdims=True)
    e = jnp.exp(s)
    denom = jnp.sum(e, axis=-1, keepdims=True)

    if dropout_p > 0.0:
        # Training-mode dropout: keep with prob (1-p), scale kept values by
        # 1/(1-p).  The scale is a Python (trace-time) constant folded into
        # the softmax normalization, so dropout costs one compare + select.
        keep_scale = 0.0 if dropout_p >= 1.0 else 1.0 / (1.0 - dropout_p)
        inv = keep_scale / denom                     # (B, S, 1)
        probs = jnp.where(u_ref[...] >= dropout_p, e * inv, 0.0)
    else:
        probs = e / denom

    # batched matmul with value
    out = jnp.einsum("bqk,bkd->bqd", probs, v,
                     preferred_element_type=jnp.float32)
    o_ref[...] = out.astype(o_ref.dtype)


@functools.partial(jax.jit, static_argnames=("dropout_p", "seed"))
def model_forward(query, key, value, scale_factor=1.0, dropout_p=0.0, seed=0):
    del scale_factor  # unused, mirroring the PyTorch forward
    B, S, D = query.shape
    Dv = value.shape[-1]

    # One bulk uniform draw for the whole (B, S, D) probs tensor.
    u = jax.random.uniform(jax.random.PRNGKey(seed), (B, S, D),
                           dtype=jnp.float32)

    vmem = pl.BlockSpec(memory_space=pltpu.MemorySpace.VMEM)
    kernel = functools.partial(_sdp_kernel, dropout_p=float(dropout_p))

    # Single invocation, no grid: full arrays live in VMEM (total < 4 KB).
    return pl.pallas_call(
        kernel,
        out_shape=jax.ShapeDtypeStruct((B, S, Dv), query.dtype),
        in_specs=[vmem, vmem, vmem, vmem],
        out_specs=vmem,
    )(query, key, value, u)


if __name__ == "__main__":
    B, S, D = 3, 8, 8  # consistent shapes for query/key/value

    k0, k1, k2 = jax.random.split(jax.random.PRNGKey(0), 3)
    query = jax.random.normal(k0, (B, S, D), dtype=jnp.float32)
    key = jax.random.normal(k1, (B, S, D), dtype=jnp.float32)
    value = jax.random.normal(k2, (B, S, D), dtype=jnp.float32)

    # 1) dropout_p = 1 (as in the original script): output must be all zeros.
    out_p1 = model_forward(query, key, value, scale_factor=1.0,
                           dropout_p=1.0, seed=0)
    jax.block_until_ready(out_p1)
    assert jnp.allclose(out_p1, 0.0), "dropout_p=1 should zero everything"

    # 2) dropout_p = 0: deterministic, check against a pure-JAX reference.
    out_p0 = model_forward(query, key, value, scale_factor=1.0,
                           dropout_p=0.0, seed=0)
    jax.block_until_ready(out_p0)
    ref = jnp.matmul(jax.nn.softmax(jax.nn.relu(query + key), axis=-1), value)
    assert jnp.allclose(out_p0, ref, atol=1e-5, rtol=1e-5), "mismatch vs ref"

    print("KERNEL_OK")
</pallas_src>

<mosaic_0001>
module attributes {stable_mosaic.version = 11 : i64} {
  func.func @_sdp_kernel(%arg0: memref<3x8x8xf32, #tpu.memory_space<vmem>>, %arg1: memref<3x8x8xf32, #tpu.memory_space<vmem>>, %arg2: memref<3x8x8xf32, #tpu.memory_space<vmem>>, %arg3: memref<3x8x8xf32, #tpu.memory_space<vmem>>, %arg4: memref<3x8x8xf32, #tpu.memory_space<vmem>>) attributes {dimension_semantics = [], scalar_prefetch = 0 : i64, scratch_operands = 0 : i64, tpu.core_type = #tpu.core_type<tc>} {
    %c0 = arith.constant 0 : index
    %c0_0 = arith.constant 0 : index
    %c0_1 = arith.constant 0 : index
    %0 = vector.load %arg0[%c0, %c0_0, %c0_1] : memref<3x8x8xf32, #tpu.memory_space<vmem>>, vector<3x8x8xf32>
    %c0_2 = arith.constant 0 : index
    %c0_3 = arith.constant 0 : index
    %c0_4 = arith.constant 0 : index
    %1 = vector.load %arg1[%c0_2, %c0_3, %c0_4] : memref<3x8x8xf32, #tpu.memory_space<vmem>>, vector<3x8x8xf32>
    %c0_5 = arith.constant 0 : index
    %c0_6 = arith.constant 0 : index
    %c0_7 = arith.constant 0 : index
    %2 = vector.load %arg2[%c0_5, %c0_6, %c0_7] : memref<3x8x8xf32, #tpu.memory_space<vmem>>, vector<3x8x8xf32>
    %3 = arith.addf %0, %1 : vector<3x8x8xf32>
    %cst = arith.constant 0.000000e+00 : f32
    %4 = vector.broadcast %cst : f32 to vector<3x8x8xf32>
    %5 = arith.maximumf %3, %4 : vector<3x8x8xf32>
    %cst_8 = arith.constant dense<0xFF800000> : vector<3x8xf32>
    %6 = vector.multi_reduction <maximumf>, %5, %cst_8 [2] : vector<3x8x8xf32> to vector<3x8xf32>
    %7 = vector.shape_cast %6 : vector<3x8xf32> to vector<3x8x1xf32>
    %8 = vector.broadcast %7 : vector<3x8x1xf32> to vector<3x8x8xf32>
    %9 = arith.subf %5, %8 : vector<3x8x8xf32>
    %10 = math.exp %9 : vector<3x8x8xf32>
    %cst_9 = arith.constant dense<0.000000e+00> : vector<3x8xf32>
    %11 = vector.multi_reduction <add>, %10, %cst_9 [2] : vector<3x8x8xf32> to vector<3x8xf32>
    %12 = vector.shape_cast %11 : vector<3x8xf32> to vector<3x8x1xf32>
    %cst_10 = arith.constant 0.000000e+00 : f32
    %13 = vector.broadcast %cst_10 : f32 to vector<3x8x1xf32>
    %14 = arith.divf %13, %12 : vector<3x8x1xf32>
    %c0_11 = arith.constant 0 : index
    %c0_12 = arith.constant 0 : index
    %c0_13 = arith.constant 0 : index
    %15 = vector.load %arg3[%c0_11, %c0_12, %c0_13] : memref<3x8x8xf32, #tpu.memory_space<vmem>>, vector<3x8x8xf32>
    %cst_14 = arith.constant 1.000000e+00 : f32
    %16 = vector.broadcast %cst_14 : f32 to vector<3x8x8xf32>
    %17 = arith.cmpf oge, %15, %16 : vector<3x8x8xf32>
    %18 = vector.broadcast %14 : vector<3x8x1xf32> to vector<3x8x8xf32>
    %19 = arith.mulf %10, %18 : vector<3x8x8xf32>
    %cst_15 = arith.constant 0.000000e+00 : f32
    %20 = vector.broadcast %cst_15 : f32 to vector<3x8x8xf32>
    %21 = arith.select %17, %19, %20 : vector<3x8x8xi1>, vector<3x8x8xf32>
    "tpu.trace_start"() <{level = 10 : i32, message = "bqk,bkd->bqd"}> : () -> ()
    %cst_16 = arith.constant dense<0.000000e+00> : vector<3x8x8xf32>
    %22 = tpu.matmul %21, %2, %cst_16 {dimension_numbers = #tpu.dot_dimension_numbers<[2], [1], [1], [2], [0, 0, 0, 1, 1, 2], [0], [0]>} : vector<3x8x8xf32>, vector<3x8x8xf32>, vector<3x8x8xf32> -> vector<3x8x8xf32>
    "tpu.trace_stop"() : () -> ()
    %c0_17 = arith.constant 0 : index
    %c0_18 = arith.constant 0 : index
    %c0_19 = arith.constant 0 : index
    %23 = vector.load %arg4[%c0_17, %c0_18, %c0_19] : memref<3x8x8xf32, #tpu.memory_space<vmem>>, vector<3x8x8xf32>
    tpu.vector_store %arg4[%c0_17, %c0_18, %c0_19], %22 {strides = array<i32>} : memref<3x8x8xf32, #tpu.memory_space<vmem>>, vector<3x8x8xf32>,
    return
  }
}

</mosaic_0001>

<llo_original>
// kernel: model_forward.1
$region0: #{model_forward.1}
  #allocation0 [shape = 'u32[]', space=smem, size = 0x4, offset = 0x4, fixed_abs, tag = 'smem constant byte address 0x4 - core index']
  #allocation1 [shape = 'u32[72,128]{1,0:T(1,128)}', space=vmem, size = 0x9000, scoped, tag = 'internal scratch']
  %s0 = inlined_call_operand.vmem [shape: f32[3,8,8], index: 0, kind: input, shape index: {}]
  %s1 = inlined_call_operand.hbm [shape: f32[3,8,8], index: 1, kind: input, shape index: {}]
  %s2 = inlined_call_operand.hbm [shape: f32[3,8,8], index: 2, kind: input, shape index: {}]
  %s3 = inlined_call_operand.vmem [shape: f32[3,8,8], index: 3, kind: input, shape index: {}]
  %s4 = inlined_call_operand.hbm [shape: f32[3,8,8], index: 4, kind: output, shape index: {}]
  %s5 = sld [smem:[#allocation0]]
  $region34: #{model_forward.1} parent=0
    _
  %s7 = ssub.s32 1, %s5
  %s8 = scalar_select 0, %s7, %s5
  $region1: #{model_forward.1} parent=0
    #allocation2 [shape = 'u8[12288]{0}', space=vmem, size = 0x3000, scoped, tag = 'input window, operand 1, single buffered']
    #allocation3 [shape = 's32[1]{0}', space=sflag, size = 0x4, scoped, tag = 'scoped memory for model_forward.1']
    #allocation4 [shape = 's32[1]{0}', space=sflag, size = 0x4, scoped, tag = 'scoped memory for model_forward.1']
    #allocation5 [shape = 'u8[12288]{0}', space=vmem, size = 0x3000, scoped, tag = 'input window, operand 2, single buffered']
    #allocation6 [shape = 's32[1]{0}', space=sflag, size = 0x4, scoped, tag = 'scoped memory for model_forward.1']
    #allocation7 [shape = 'u8[12288]{0}', space=vmem, size = 0x3000, scoped, tag = 'output window, operand 0, single buffered']
    %9 = vsyncpa [#allocation3], 0
    %10 = vsyncpa [#allocation6], 0
    %11 = vsyncpa [#allocation4], 0
    // Predicated region
    $region2: #{model_forward.1} parent=1 // pred_check
      _
    $region3: #{model_forward.1} parent=1 // pred_check_branch
      %13 = sbr.rel (0) target = $region5
    $region4: #{model_forward.1} parent=1 // pred_region
      _
    $region5: #{model_forward.1} parent=1 // pred_fallthru
      _
    // Predicated region
    $region6: #{model_forward.1} parent=1 // pred_check
      _
    $region7: #{model_forward.1} parent=1 // pred_check_branch
      %15 = sbr.rel (0) target = $region9
    $region8: #{model_forward.1} parent=1 // pred_region
      %17 = vsyncadd [#allocation3], 0
      %s18 = sshll.u32 %s1, 4
      %s19 = int_to_ptr.hbm [resolvable:$true] %s18
      %s20 = sshll.u32 [#allocation2], 4
      %s21 = int_to_ptr.vmem [resolvable:$true] %s20
      %26 = dma.hbm_to_vmem [thread:$0]  %s19, 384, %s21, [#allocation3], 128, 128, 8
    $region9: #{model_forward.1} parent=1 // pred_fallthru
      _
    // Predicated region
    $region10: #{model_forward.1} parent=1 // pred_check
      _
    $region11: #{model_forward.1} parent=1 // pred_check_branch
      %28 = sbr.rel (0) target = $region13
    $region12: #{model_forward.1} parent=1 // pred_region
      %30 = vsyncadd [#allocation6], 0
      %s31 = sshll.u32 %s2, 4
      %s32 = int_to_ptr.hbm [resolvable:$true] %s31
      %s33 = sshll.u32 [#allocation5], 4
      %s34 = int_to_ptr.vmem [resolvable:$true] %s33
      %39 = dma.hbm_to_vmem [thread:$0]  %s32, 384, %s34, [#allocation6], 128, 128, 8
    $region13: #{model_forward.1} parent=1 // pred_fallthru
      _
    // Predicated region
    $region14: #{model_forward.1} parent=1 // pred_check
      _
    $region15: #{model_forward.1} parent=1 // pred_check_branch
      %41 = sbr.rel (0) target = $region17
    $region16: #{model_forward.1} parent=1 // pred_region
      _
    $region17: #{model_forward.1} parent=1 // pred_fallthru
      _
    // Predicated region
    $region18: #{model_forward.1} parent=1 // pred_check
      _
    $region19: #{model_forward.1} parent=1 // pred_check_branch
      %43 = sbr.rel (0) target = $region21
    $region20: #{model_forward.1} parent=1 // pred_region
      %45 = dma.done [#allocation3], 384
    $region21: #{model_forward.1} parent=1 // pred_fallthru
      _
    // Predicated region
    $region22: #{model_forward.1} parent=1 // pred_check
      _
    $region23: #{model_forward.1} parent=1 // pred_check_branch
      %47 = sbr.rel (0) target = $region25
    $region24: #{model_forward.1} parent=1 // pred_region
      %49 = dma.done [#allocation6], 384
    $region25: #{model_forward.1} parent=1 // pred_fallthru
      _
    %v50 = vld [vmem:[%s0] sm:$0xff]
    %v51 = vld [vmem:[%s0 + $0x8] sm:$0xff]
    %v52 = vld [vmem:[%s0 + $0x10] sm:$0xff]
    %v53 = vld [vmem:[#allocation2] sm:$0xff]
    %v54 = vld [vmem:[#allocation2 + $0x8] sm:$0xff]
    %v55 = vld [vmem:[#allocation2 + $0x10] sm:$0xff]
    %v56 = vld [vmem:[#allocation5] sm:$0xff]
    %v57 = vld [vmem:[#allocation5 + $0x8] sm:$0xff]
    %v58 = vld [vmem:[#allocation5 + $0x10] sm:$0xff]
    %v59 = vadd.f32 %v50, %v53
    %v60 = vadd.f32 %v51, %v54
    %v61 = vadd.f32 %v52, %v55
    %v62 = vmax.f32 %v59, 0.0
    %v63 = vmax.f32 %v60, 0.0
    %v64 = vmax.f32 %v61, 0.0
    %vm65 = vcmask 64512
    %v66 = vsel %vm65, %v62, -inf
    %67 = vmax.xlane.f32.xlu0 %v66
    %v68 = vpop.xlane.xlu0 %67
    %v69 = vsel %vm65, %v63, -inf
    %70 = vmax.xlane.f32.xlu0 %v69
    %v71 = vpop.xlane.xlu0 %70
    %v72 = vsel %vm65, %v64, -inf
    %73 = vmax.xlane.f32.xlu0 %v72
    %v74 = vpop.xlane.xlu0 %73
    %v75 = vsub.f32 %v62, %v68
    %v76 = vsub.f32 %v63, %v71
    %v77 = vsub.f32 %v64, %v74
    %v78 = vmul.f32 %v75, 1.442695
    %v79 = vpow.pop %v78
    %v80 = vmul.f32 %v76, 1.442695
    %v81 = vpow.pop %v80
    %v82 = vmul.f32 %v77, 1.442695
    %v83 = vpow.pop %v82
    %v84 = vsel %vm65, %v79, 0.0
    %85 = vadd.xlane.f32.xlu0 %v84
    %v86 = vpop.xlane.xlu0 %85
    %v87 = vsel %vm65, %v81, 0.0
    %88 = vadd.xlane.f32.xlu0 %v87
    %v89 = vpop.xlane.xlu0 %88
    %v90 = vsel %vm65, %v83, 0.0
    %91 = vadd.xlane.f32.xlu0 %v90
    %v92 = vpop.xlane.xlu0 %91
    %v93 = vrcp.pop %v86
    %v94 = vmul.f32 %v86, %v93
    %v95 = vsub.f32 1.0, %v94
    %v96 = vmul.f32 %v93, %v95
    %v97 = vadd.f32 %v93, %v96
    %vm98 = vweird.f32 %v86
    %vm99 = vweird.f32 %v93
    %vm100 = vmor %vm98, %vm99
    %v101 = vsel %vm100, %v93, %v97
    %v102 = vand.u32 2147483647, %v86
    %vm103 = vcmp.eq.f32.partialorder %v102, 8.507059e+37
    %v104 = vand.u32 %v86, 2147483648
    %v105 = vor.u32 1.1754944e-38, %v104
    %v106 = vsel %vm103, %v105, %v101
    %v107 = vmul.f32 0.0, %v106
    %v108 = vrcp.pop %v89
    %v109 = vmul.f32 %v89, %v108
    %v110 = vsub.f32 1.0, %v109
    %v111 = vmul.f32 %v108, %v110
    %v112 = vadd.f32 %v108, %v111
    %vm113 = vweird.f32 %v89
    %vm114 = vweird.f32 %v108
    %vm115 = vmor %vm113, %vm114
    %v116 = vsel %vm115, %v108, %v112
    %v117 = vand.u32 2147483647, %v89
    %vm118 = vcmp.eq.f32.partialorder %v117, 8.507059e+37
    %v119 = vand.u32 %v89, 2147483648
    %v120 = vor.u32 1.1754944e-38, %v119
    %v121 = vsel %vm118, %v120, %v116
    %v122 = vmul.f32 0.0, %v121
    %v123 = vrcp.pop %v92
    %v124 = vmul.f32 %v92, %v123
    %v125 = vsub.f32 1.0, %v124
    %v126 = vmul.f32 %v123, %v125
    %v127 = vadd.f32 %v123, %v126
    %vm128 = vweird.f32 %v92
    %vm129 = vweird.f32 %v123
    %vm130 = vmor %vm128, %vm129
    %v131 = vsel %vm130, %v123, %v127
    %v132 = vand.u32 2147483647, %v92
    %vm133 = vcmp.eq.f32.partialorder %v132, 8.507059e+37
    %v134 = vand.u32 %v92, 2147483648
    %v135 = vor.u32 1.1754944e-38, %v134
    %v136 = vsel %vm133, %v135, %v131
    %v137 = vmul.f32 0.0, %v136
    %v138 = vld [vmem:[%s3] sm:$0xff]
    %v139 = vld [vmem:[%s3 + $0x8] sm:$0xff]
    %v140 = vld [vmem:[%s3 + $0x10] sm:$0xff]
    %vm141 = vcmp.ge.f32.partialorder %v138, 1.0
    %vm142 = vcmp.ge.f32.partialorder %v139, 1.0
    %vm143 = vcmp.ge.f32.partialorder %v140, 1.0
    %v144 = vmul.f32 %v79, %v107
    %v145 = vmul.f32 %v81, %v122
    %v146 = vmul.f32 %v83, %v137
    %v147 = vsel %vm141, %v144, 0.0
    %v148 = vsel %vm142, %v145, 0.0
    %v149 = vsel %vm143, %v146, 0.0
    %v151 = vsel %vm65, %v147, 0
    %153 = vmatpush.msra.mxu0 0.0
    %154 = vmatpush.msra.mxu0 0.0
    %155 = vmatpush.msra.mxu0 0.0
    %156 = vmatpush.msra.mxu0 0.0
    %157 = vmatpush.msra.mxu0 0.0
    %158 = vmatpush.msra.mxu0 0.0
    %159 = vmatpush.msra.mxu0 0.0
    %160 = vmatpush.msra.mxu0 0.0
    %161 = vmatpush.msra.mxu0 0.0
    %162 = vmatpush.msra.mxu0 0.0
    %163 = vmatpush.msra.mxu0 0.0
    %164 = vmatpush.msra.mxu0 0.0
    %165 = vmatpush.msra.mxu0 0.0
    %166 = vmatpush.msra.mxu0 0.0
    %167 = vmatpush.msra.mxu0 0.0
    %168 = vmatpush.msra.mxu0 %v56
    %169 = vmatmul.f32.gmra.mxu0 %v151
    %v170 = vpop.f32.mrf.mxu0
    %v171 = vadd.f32 0.0, %v170
    %172 = vdwg.mxu0
    %v174 = vsel %vm65, %v148, 0
    %176 = vmatpush.msra.mxu0 0.0
    %177 = vmatpush.msra.mxu0 0.0
    %178 = vmatpush.msra.mxu0 0.0
    %179 = vmatpush.msra.mxu0 0.0
    %180 = vmatpush.msra.mxu0 0.0
    %181 = vmatpush.msra.mxu0 0.0
    %182 = vmatpush.msra.mxu0 0.0
    %183 = vmatpush.msra.mxu0 0.0
    %184 = vmatpush.msra.mxu0 0.0
    %185 = vmatpush.msra.mxu0 0.0
    %186 = vmatpush.msra.mxu0 0.0
    %187 = vmatpush.msra.mxu0 0.0
    %188 = vmatpush.msra.mxu0 0.0
    %189 = vmatpush.msra.mxu0 0.0
    %190 = vmatpush.msra.mxu0 0.0
    %191 = vmatpush.msra.mxu0 %v57
    %192 = vmatmul.f32.gmra.mxu0 %v174
    %v193 = vpop.f32.mrf.mxu0
    %v194 = vadd.f32 0.0, %v193
    %195 = vdwg.mxu0
    %v197 = vsel %vm65, %v149, 0
    %199 = vmatpush.msra.mxu0 0.0
    %200 = vmatpush.msra.mxu0 0.0
    %201 = vmatpush.msra.mxu0 0.0
    %202 = vmatpush.msra.mxu0 0.0
    %203 = vmatpush.msra.mxu0 0.0
    %204 = vmatpush.msra.mxu0 0.0
    %205 = vmatpush.msra.mxu0 0.0
    %206 = vmatpush.msra.mxu0 0.0
    %207 = vmatpush.msra.mxu0 0.0
    %208 = vmatpush.msra.mxu0 0.0
    %209 = vmatpush.msra.mxu0 0.0
    %210 = vmatpush.msra.mxu0 0.0
    %211 = vmatpush.msra.mxu0 0.0
    %212 = vmatpush.msra.mxu0 0.0
    %213 = vmatpush.msra.mxu0 0.0
    %214 = vmatpush.msra.mxu0 %v58
    %215 = vmatmul.f32.gmra.mxu0 %v197
    %v216 = vpop.f32.mrf.mxu0
    %v217 = vadd.f32 0.0, %v216
    %218 = vdwg.mxu0
    %219 = vst.msk [vmem:[#allocation7] sm:$0xff] %vm65, %v171
    %220 = vst.msk [vmem:[#allocation7 + $0x8] sm:$0xff] %vm65, %v194
    %221 = vst.msk [vmem:[#allocation7 + $0x10] sm:$0xff] %vm65, %v217
    // Predicated region
    $region26: #{model_forward.1} parent=1 // pred_check
      _
    $region27: #{model_forward.1} parent=1 // pred_check_branch
      %223 = sbr.rel (0) target = $region29
    $region28: #{model_forward.1} parent=1 // pred_region
      %225 = vsyncadd [#allocation4], 0
      %s226 = sshll.u32 [#allocation7], 4
      %s227 = int_to_ptr.vmem [resolvable:$true] %s226
      %s228 = sshll.u32 %s4, 4
      %s229 = int_to_ptr.hbm [resolvable:$true] %s228
      %234 = dma.vmem_to_hbm [thread:$0]  %s227, 384, %s229, [#allocation4], 128, 128, 8
    $region29: #{model_forward.1} parent=1 // pred_fallthru
      _
    // Predicated region
    $region30: #{model_forward.1} parent=1 // pred_check
      _
    $region31: #{model_forward.1} parent=1 // pred_check_branch
      %236 = sbr.rel (0) target = $region33
    $region32: #{model_forward.1} parent=1 // pred_region
      %238 = dma.done [#allocation4], 384
    $region33: #{model_forward.1} parent=1 // pred_fallthru
      _
    %239 = vsyncpa [#allocation3], 1
    %240 = vsyncpa [#allocation6], 1
    %241 = vsyncpa [#allocation4], 1

</llo_original>
